<compile_context>
chip_gen: v6e
topology: v6e:2x2x1
jax: 0.10.0
libtpu: 0.0.40
codegen_flags: <defaults>
</compile_context>

<pallas_src>
import functools
import math

import jax
import jax.numpy as jnp
from jax.experimental import pallas as pl
from jax.experimental.pallas import tpu as pltpu

EPS = 1e-8


def _topdown_attn_kernel(x_ref,        # (block_b * L, D_img)  bf16   image rows
                         fq_ref,       # (block_b, 1, H)       f32    relu(q @ Wq + bq)
                         locs_ref,     # (block_b, 1, 1)       int32  valid image locations
                         wi_ref,       # (D_img, H)            bf16
                         bi_ref,       # (1, H)                f32
                         wt_ref,       # (H, A)                bf16
                         bt_ref,       # (1, A)                f32
                         out_ref,      # (block_b, L, A)       f32
                         *, normalization: str, use_locs: bool,
                         block_b: int, num_loc: int):
    TB, L = block_b, num_loc
    H = wi_ref.shape[1]
    A = wt_ref.shape[1]

    # --- combination layer: NonLinearElementMultiply --------------------------
    # One big (TB*L, D_img) @ (D_img, H) MXU matmul, f32 accumulation.
    x = x_ref[...]                                                       # bf16
    fa_img = jnp.maximum(
        jnp.dot(x, wi_ref[...], preferred_element_type=jnp.float32) + bi_ref[...],
        0.0)                                                             # (TB*L, H) f32

    # broadcast the hoisted question feature over the L locations of each batch.
    joint = fa_img.reshape(TB, L, H) * fq_ref[...]                       # (TB, L, H) f32

    # --- transform: linear projection to attention logits ---------------------
    raw = (jnp.dot(joint.reshape(TB * L, H).astype(wt_ref.dtype), wt_ref[...],
                   preferred_element_type=jnp.float32)
           + bt_ref[...]).reshape(TB, L, A)                              # (TB, L, A) f32

    # --- normalization over the num_loc axis (torch dim=1) --------------------
    if normalization == "softmax":
        m = jnp.max(raw, axis=1, keepdims=True)
        e = jnp.exp(raw - m)
        att = e * pl.reciprocal(jnp.sum(e, axis=1, keepdims=True), approx=True)
    else:  # "sigmoid"
        att = jax.nn.sigmoid(raw)

    if use_locs:
        row_ids = jax.lax.broadcasted_iota(jnp.int32, (L, A), 0)[None, :, :]  # (1, L, A)
        mask = row_ids >= locs_ref[...]                                  # (TB,1,1) -> (TB,L,A)
        att = jnp.where(mask, 0.0, att)
        if normalization == "softmax":
            s = jnp.sum(att, axis=1, keepdims=True)                      # (TB, 1, A)
            s = s + (s == 0.0).astype(jnp.float32) + EPS
            att = att * pl.reciprocal(s, approx=True)

    out_ref[...] = att


def topdown_attention(image_feat, question_embedding, params,
                      image_locs=None, normalization="softmax", block_b=None):
    """image_feat: (B, L, D_img) f32, question: (B, D_q) f32,
    image_locs: (B,) int or None.  Returns (B, L, A) f32 attention weights."""
    B, L, D_img = image_feat.shape
    w_img, b_img, w_q, b_q, w_t, b_t = params
    H = w_img.shape[1]
    A = w_t.shape[1]
    normalization = normalization.lower()

    # ---- hoisted to XLA: question projection (tiny (B,Dq)x(Dq,H) matmul) ------
    fa_q = jax.nn.relu(question_embedding @ w_q + b_q).astype(jnp.float32)   # (B, H)

    use_locs = image_locs is not None
    if image_locs is None:
        locs = jnp.full((B,), L, dtype=jnp.int32)
    else:
        locs = image_locs.astype(jnp.int32)

    # ---- batch blocking: aim for >=256 image rows per grid step ---------------
    if block_b is None:
        block_b = max(1, min(B, -(-256 // max(L, 1))))
    # keep rows-per-block a multiple of 8 (sublane tile) when the batch is split
    step = 8 // math.gcd(L, 8)
    block_b = -(-block_b // step) * step
    B_pad = -(-B // block_b) * block_b
    n_blocks = B_pad // block_b

    x = image_feat.astype(jnp.bfloat16)
    if B_pad != B:
        pad = B_pad - B
        x = jnp.concatenate([x, jnp.zeros((pad, L, D_img), x.dtype)], axis=0)
        fa_q = jnp.concatenate([fa_q, jnp.zeros((pad, H), fa_q.dtype)], axis=0)
        locs = jnp.concatenate([locs, jnp.full((pad,), L, jnp.int32)], axis=0)

    x_flat = x.reshape(B_pad * L, D_img)            # rows for the big matmul (bf16)
    fa_q3 = fa_q.reshape(B_pad, 1, H)               # (B,1,H) -> per-block (TB,1,H)
    locs3 = locs.reshape(B_pad, 1, 1)               # (B,1,1) int32

    wi = w_img.astype(jnp.bfloat16)
    wt = w_t.astype(jnp.bfloat16)
    bi = b_img.reshape(1, H).astype(jnp.float32)
    bt = b_t.reshape(1, A).astype(jnp.float32)

    kernel = functools.partial(_topdown_attn_kernel,
                               normalization=normalization,
                               use_locs=use_locs,
                               block_b=block_b,
                               num_loc=L)

    flops = 2 * B_pad * L * D_img * H + 2 * B_pad * L * H * A
    bytes_accessed = (x_flat.size * 2 + fa_q3.size * 4 + locs3.size * 4
                      + wi.size * 2 + bi.size * 4 + wt.size * 2 + bt.size * 4
                      + B_pad * L * A * 4)

    grid_spec = pltpu.PrefetchScalarGridSpec(
        num_scalar_prefetch=0,
        grid=(n_blocks,),
        in_specs=[
            pl.BlockSpec((block_b * L, D_img), lambda g: (g, 0)),     # image rows (bf16)
            pl.BlockSpec((block_b, 1, H),      lambda g: (g, 0, 0)),  # fa_q (f32)
            pl.BlockSpec((block_b, 1, 1),      lambda g: (g, 0, 0)),  # image_locs (i32)
            pl.BlockSpec((D_img, H),           lambda g: (0, 0)),     # W_img (bf16, resident)
            pl.BlockSpec((1, H),               lambda g: (0, 0)),     # b_img
            pl.BlockSpec((H, A),               lambda g: (0, 0)),     # W_t (bf16, resident)
            pl.BlockSpec((1, A),               lambda g: (0, 0)),     # b_t
        ],
        out_specs=pl.BlockSpec((block_b, L, A), lambda g: (g, 0, 0)),
    )

    out = pl.pallas_call(
        kernel,
        out_shape=jax.ShapeDtypeStruct((B_pad, L, A), jnp.float32),
        grid_spec=grid_spec,
        compiler_params=pltpu.CompilerParams(
            dimension_semantics=("parallel",),        # disjoint out blocks -> 2 TCs on v7x
            vmem_limit_bytes=32 * 1024 * 1024),
        cost_estimate=pl.CostEstimate(
            flops=flops,
            transcendentals=B_pad * L * A,
            bytes_accessed=bytes_accessed),
    )(x_flat, fa_q3, locs3, wi, bi, wt, bt)

    return out[:B] if B_pad != B else out


def _reference(image_feat, question, params, image_locs, normalization="softmax"):
    """Pure-JAX reference reproducing the PyTorch forward semantics, mirroring the
    bf16 MXU operand casts (f32 accumulation) used by the kernel."""
    w_img, b_img, w_q, b_q, w_t, b_t = params
    x_bf = image_feat.astype(jnp.bfloat16)
    wi_bf = w_img.astype(jnp.bfloat16)
    wt_bf = w_t.astype(jnp.bfloat16)

    fa_img = jax.nn.relu(
        jnp.einsum("bld,dh->blh", x_bf, wi_bf,
                   preferred_element_type=jnp.float32) + b_img)
    fa_q = jax.nn.relu(question @ w_q + b_q)
    joint = fa_img * fa_q[:, None, :]
    raw = jnp.einsum("blh,ha->bla", joint.astype(jnp.bfloat16), wt_bf,
                     preferred_element_type=jnp.float32) + b_t
    B, L, A = raw.shape
    if normalization.lower() == "softmax":
        att = jax.nn.softmax(raw, axis=1)
    else:
        att = jax.nn.sigmoid(raw)
    if image_locs is not None:
        ids = jnp.arange(L, dtype=jnp.int32)[None, :]
        mask = ids >= image_locs[:, None].astype(jnp.int32)
        att = jnp.where(mask[:, :, None], 0.0, att)
        if normalization.lower() == "softmax":
            s = jnp.sum(att, axis=1, keepdims=True)
            s = s + (s == 0).astype(jnp.float32) + EPS
            att = att / s
    return att


if __name__ == "__main__":
    B, L, D_img, D_q, H, A = 2, 8, 32, 32, 32, 2

    key = jax.random.PRNGKey(0)
    k1, k2, k3, k4, k5, k6, k7, k8 = jax.random.split(key, 8)

    image_feat = jax.random.normal(k1, (B, L, D_img), dtype=jnp.float32)
    question = jax.random.normal(k2, (B, D_q), dtype=jnp.float32)
    image_locs = jnp.array([5, 8], dtype=jnp.int32)   # valid locations per batch

    w_img = jax.random.normal(k3, (D_img, H), dtype=jnp.float32) / jnp.sqrt(D_img)
    b_img = jax.random.normal(k4, (1, H), dtype=jnp.float32) * 0.01
    w_q = jax.random.normal(k5, (D_q, H), dtype=jnp.float32) / jnp.sqrt(D_q)
    b_q = jax.random.normal(k6, (1, H), dtype=jnp.float32) * 0.01
    w_t = jax.random.normal(k7, (H, A), dtype=jnp.float32) / jnp.sqrt(H)
    b_t = jax.random.normal(k8, (1, A), dtype=jnp.float32) * 0.01
    params = (w_img, b_img, w_q, b_q, w_t, b_t)

    # --- masked softmax path ---
    out = topdown_attention(image_feat, question, params,
                            image_locs=image_locs, normalization="softmax")
    out = jax.block_until_ready(out)
    ref = _reference(image_feat, question, params, image_locs, "softmax")
    assert out.shape == (B, L, A)
    assert jnp.allclose(out, ref, atol=5e-3, rtol=5e-3), "mismatch vs reference (masked)"
    # masked positions must be exactly zero
    assert bool(jnp.all(out[0, 5:, :] == 0.0)), "mask not applied"

    # --- unmasked softmax path ---
    out2 = topdown_attention(image_feat, question, params,
                             image_locs=None, normalization="softmax")
    out2 = jax.block_until_ready(out2)
    ref2 = _reference(image_feat, question, params, None, "softmax")
    assert jnp.allclose(out2, ref2, atol=5e-3, rtol=5e-3), "mismatch vs reference (unmasked)"

    print("KERNEL_OK")
</pallas_src>

<mosaic_0001>
module attributes {stable_mosaic.version = 11 : i64} {
  func.func @_topdown_attn_kernel(%arg0: i32, %arg1: memref<16x32xbf16, #tpu.memory_space<vmem>>, %arg2: memref<2x1x32xf32, #tpu.memory_space<vmem>>, %arg3: memref<2x1x1xi32, #tpu.memory_space<vmem>>, %arg4: memref<32x32xbf16, #tpu.memory_space<vmem>>, %arg5: memref<1x32xf32, #tpu.memory_space<vmem>>, %arg6: memref<32x2xbf16, #tpu.memory_space<vmem>>, %arg7: memref<1x2xf32, #tpu.memory_space<vmem>>, %arg8: memref<2x8x2xf32, #tpu.memory_space<vmem>>) attributes {dimension_semantics = [#tpu.dimension_semantics<parallel>], iteration_bounds = array<i64: 1>, scalar_prefetch = 0 : i64, scratch_operands = 0 : i64, tpu.core_type = #tpu.core_type<tc>, window_params = [{transform_indices = @transform_0, window_bounds = array<i64: 16, 32>}, {transform_indices = @transform_1, window_bounds = array<i64: 2, 1, 32>}, {transform_indices = @transform_2, window_bounds = array<i64: 2, 1, 1>}, {pipeline_mode = #tpu.pipeline_mode<synchronous>, transform_indices = @transform_3, window_bounds = array<i64: 32, 32>}, {pipeline_mode = #tpu.pipeline_mode<synchronous>, transform_indices = @transform_4, window_bounds = array<i64: 1, 32>}, {pipeline_mode = #tpu.pipeline_mode<synchronous>, transform_indices = @transform_5, window_bounds = array<i64: 32, 2>}, {pipeline_mode = #tpu.pipeline_mode<synchronous>, transform_indices = @transform_6, window_bounds = array<i64: 1, 2>}, {transform_indices = @transform_7, window_bounds = array<i64: 2, 8, 2>}]} {
    %c0 = arith.constant 0 : index
    %c0_0 = arith.constant 0 : index
    %0 = vector.load %arg1[%c0, %c0_0] : memref<16x32xbf16, #tpu.memory_space<vmem>>, vector<16x32xbf16>
    %c0_1 = arith.constant 0 : index
    %c0_2 = arith.constant 0 : index
    %1 = vector.load %arg4[%c0_1, %c0_2] : memref<32x32xbf16, #tpu.memory_space<vmem>>, vector<32x32xbf16>
    %cst = arith.constant dense<0.000000e+00> : vector<16x32xf32>
    %2 = tpu.matmul %0, %1, %cst {dimension_numbers = #tpu.dot_dimension_numbers<[1], [0], [0], [1], [0, 0, 1, 1], [], []>} : vector<16x32xbf16>, vector<32x32xbf16>, vector<16x32xf32> -> vector<16x32xf32>
    %c0_3 = arith.constant 0 : index
    %c0_4 = arith.constant 0 : index
    %3 = vector.load %arg5[%c0_3, %c0_4] : memref<1x32xf32, #tpu.memory_space<vmem>>, vector<1x32xf32>
    %4 = vector.broadcast %3 : vector<1x32xf32> to vector<16x32xf32>
    %5 = arith.addf %2, %4 : vector<16x32xf32>
    %cst_5 = arith.constant 0.000000e+00 : f32
    %6 = vector.broadcast %cst_5 : f32 to vector<16x32xf32>
    %7 = arith.maximumf %5, %6 : vector<16x32xf32>
    %8 = vector.shape_cast %7 : vector<16x32xf32> to vector<2x8x32xf32>
    %c0_6 = arith.constant 0 : index
    %c0_7 = arith.constant 0 : index
    %c0_8 = arith.constant 0 : index
    %9 = vector.load %arg2[%c0_6, %c0_7, %c0_8] : memref<2x1x32xf32, #tpu.memory_space<vmem>>, vector<2x1x32xf32>
    %10 = vector.broadcast %9 : vector<2x1x32xf32> to vector<2x8x32xf32>
    %11 = arith.mulf %8, %10 : vector<2x8x32xf32>
    %12 = vector.shape_cast %11 : vector<2x8x32xf32> to vector<16x32xf32>
    %13 = arith.truncf %12 : vector<16x32xf32> to vector<16x32xbf16>
    %c0_9 = arith.constant 0 : index
    %c0_10 = arith.constant 0 : index
    %14 = vector.load %arg6[%c0_9, %c0_10] : memref<32x2xbf16, #tpu.memory_space<vmem>>, vector<32x2xbf16>
    %cst_11 = arith.constant dense<0.000000e+00> : vector<16x2xf32>
    %15 = tpu.matmul %13, %14, %cst_11 {dimension_numbers = #tpu.dot_dimension_numbers<[1], [0], [0], [1], [0, 0, 1, 1], [], []>} : vector<16x32xbf16>, vector<32x2xbf16>, vector<16x2xf32> -> vector<16x2xf32>
    %c0_12 = arith.constant 0 : index
    %c0_13 = arith.constant 0 : index
    %16 = vector.load %arg7[%c0_12, %c0_13] : memref<1x2xf32, #tpu.memory_space<vmem>>, vector<1x2xf32>
    %17 = vector.broadcast %16 : vector<1x2xf32> to vector<16x2xf32>
    %18 = arith.addf %15, %17 : vector<16x2xf32>
    %19 = vector.shape_cast %18 : vector<16x2xf32> to vector<2x8x2xf32>
    %cst_14 = arith.constant dense<0xFF800000> : vector<2x2xf32>
    %20 = vector.multi_reduction <maximumf>, %19, %cst_14 [1] : vector<2x8x2xf32> to vector<2x2xf32>
    %21 = vector.shape_cast %20 : vector<2x2xf32> to vector<2x1x2xf32>
    %22 = vector.broadcast %21 : vector<2x1x2xf32> to vector<2x8x2xf32>
    %23 = arith.subf %19, %22 : vector<2x8x2xf32>
    %24 = math.exp %23 : vector<2x8x2xf32>
    %cst_15 = arith.constant dense<0.000000e+00> : vector<2x2xf32>
    %25 = vector.multi_reduction <add>, %24, %cst_15 [1] : vector<2x8x2xf32> to vector<2x2xf32>
    %26 = vector.shape_cast %25 : vector<2x2xf32> to vector<2x1x2xf32>
    %27 = tpu.reciprocal %26 {approx = true} : vector<2x1x2xf32> -> vector<2x1x2xf32>
    %28 = vector.broadcast %27 : vector<2x1x2xf32> to vector<2x8x2xf32>
    %29 = arith.mulf %24, %28 : vector<2x8x2xf32>
    %30 = tpu.iota {dimensions = array<i32: 0>} : vector<8x2xi32>
    %31 = vector.shape_cast %30 : vector<8x2xi32> to vector<1x8x2xi32>
    %c0_16 = arith.constant 0 : index
    %c0_17 = arith.constant 0 : index
    %c0_18 = arith.constant 0 : index
    %32 = vector.load %arg3[%c0_16, %c0_17, %c0_18] : memref<2x1x1xi32, #tpu.memory_space<vmem>>, vector<2x1x1xi32>
    %33 = vector.broadcast %31 : vector<1x8x2xi32> to vector<2x8x2xi32>
    %34 = vector.broadcast %32 : vector<2x1x1xi32> to vector<2x8x2xi32>
    %35 = arith.cmpi sge, %33, %34 : vector<2x8x2xi32>
    %cst_19 = arith.constant 0.000000e+00 : f32
    %36 = vector.broadcast %cst_19 : f32 to vector<2x8x2xf32>
    %37 = arith.select %35, %36, %29 : vector<2x8x2xi1>, vector<2x8x2xf32>
    %cst_20 = arith.constant dense<0.000000e+00> : vector<2x2xf32>
    %38 = vector.multi_reduction <add>, %37, %cst_20 [1] : vector<2x8x2xf32> to vector<2x2xf32>
    %39 = vector.shape_cast %38 : vector<2x2xf32> to vector<2x1x2xf32>
    %cst_21 = arith.constant 0.000000e+00 : f32
    %40 = vector.broadcast %cst_21 : f32 to vector<2x1x2xf32>
    %41 = arith.cmpf oeq, %39, %40 : vector<2x1x2xf32>
    %42 = arith.extui %41 : vector<2x1x2xi1> to vector<2x1x2xi32>
    %43 = arith.sitofp %42 : vector<2x1x2xi32> to vector<2x1x2xf32>
    %44 = arith.addf %39, %43 : vector<2x1x2xf32>
    %cst_22 = arith.constant 9.99999993E-9 : f32
    %45 = vector.broadcast %cst_22 : f32 to vector<2x1x2xf32>
    %46 = arith.addf %44, %45 : vector<2x1x2xf32>
    %47 = tpu.reciprocal %46 {approx = true} : vector<2x1x2xf32> -> vector<2x1x2xf32>
    %48 = vector.broadcast %47 : vector<2x1x2xf32> to vector<2x8x2xf32>
    %49 = arith.mulf %37, %48 : vector<2x8x2xf32>
    %c0_23 = arith.constant 0 : index
    %c0_24 = arith.constant 0 : index
    %c0_25 = arith.constant 0 : index
    %50 = vector.load %arg8[%c0_23, %c0_24, %c0_25] : memref<2x8x2xf32, #tpu.memory_space<vmem>>, vector<2x8x2xf32>
    tpu.vector_store %arg8[%c0_23, %c0_24, %c0_25], %49 {strides = array<i32>} : memref<2x8x2xf32, #tpu.memory_space<vmem>>, vector<2x8x2xf32>,
    return
  }
  func.func @transform_0(%arg0: i32) -> (i32, i32) {
    %c0_i32 = arith.constant 0 : i32
    %c0_i32_0 = arith.constant 0 : i32
    return %arg0, %c0_i32 : i32, i32
  }
  func.func @transform_1(%arg0: i32) -> (i32, i32, i32) {
    %c0_i32 = arith.constant 0 : i32
    %c0_i32_0 = arith.constant 0 : i32
    %c0_i32_1 = arith.constant 0 : i32
    return %arg0, %c0_i32, %c0_i32_0 : i32, i32, i32
  }
  func.func @transform_2(%arg0: i32) -> (i32, i32, i32) {
    %c0_i32 = arith.constant 0 : i32
    %c0_i32_0 = arith.constant 0 : i32
    %c0_i32_1 = arith.constant 0 : i32
    return %arg0, %c0_i32, %c0_i32_0 : i32, i32, i32
  }
  func.func @transform_3(%arg0: i32) -> (i32, i32) {
    %c0_i32 = arith.constant 0 : i32
    %c0_i32_0 = arith.constant 0 : i32
    %c0_i32_1 = arith.constant 0 : i32
    return %c0_i32, %c0_i32_0 : i32, i32
  }
  func.func @transform_4(%arg0: i32) -> (i32, i32) {
    %c0_i32 = arith.constant 0 : i32
    %c0_i32_0 = arith.constant 0 : i32
    %c0_i32_1 = arith.constant 0 : i32
    return %c0_i32, %c0_i32_0 : i32, i32
  }
  func.func @transform_5(%arg0: i32) -> (i32, i32) {
    %c0_i32 = arith.constant 0 : i32
    %c0_i32_0 = arith.constant 0 : i32
    %c0_i32_1 = arith.constant 0 : i32
    return %c0_i32, %c0_i32_0 : i32, i32
  }
  func.func @transform_6(%arg0: i32) -> (i32, i32) {
    %c0_i32 = arith.constant 0 : i32
    %c0_i32_0 = arith.constant 0 : i32
    %c0_i32_1 = arith.constant 0 : i32
    return %c0_i32, %c0_i32_0 : i32, i32
  }
  func.func @transform_7(%arg0: i32) -> (i32, i32, i32) {
    %c0_i32 = arith.constant 0 : i32
    %c0_i32_0 = arith.constant 0 : i32
    %c0_i32_1 = arith.constant 0 : i32
    return %arg0, %c0_i32, %c0_i32_0 : i32, i32, i32
  }
}

</mosaic_0001>

<llo_original>
// kernel: tpu_custom_call.1
$region0: #{tpu_custom_call.1}
  #allocation0 [shape = 'u32[]', space=smem, size = 0x4, offset = 0x4, fixed_abs, tag = 'smem constant byte address 0x4 - core index']
  #allocation1 [shape = 'u32[144,128]{1,0:T(1,128)}', space=vmem, size = 0x12000, scoped, tag = 'internal scratch']
  %s0 = inlined_call_operand.vmem [shape: bf16[16,32], index: 0, kind: input, shape index: {}]
  %s1 = inlined_call_operand.hbm [shape: f32[2,1,32], index: 1, kind: input, shape index: {}]
  %s2 = inlined_call_operand.vmem [shape: s32[2,1,1], index: 2, kind: input, shape index: {}]
  %s3 = inlined_call_operand.vmem [shape: bf16[32,32], index: 3, kind: input, shape index: {}]
  %s4 = inlined_call_operand.vmem [shape: f32[1,32], index: 4, kind: input, shape index: {}]
  %s5 = inlined_call_operand.vmem [shape: bf16[32,2], index: 5, kind: input, shape index: {}]
  %s6 = inlined_call_operand.vmem [shape: f32[1,2], index: 6, kind: input, shape index: {}]
  %s7 = inlined_call_operand.vmem [shape: f32[2,8,2], index: 7, kind: output, shape index: {}]
  %s8 = sld [smem:[#allocation0]]
  $region42: #{tpu_custom_call.1} parent=0
    _
  %s10 = ssub.s32 1, %s8
  %s11 = scalar_select 0, %s10, %s8
  $region1: #{tpu_custom_call.1} parent=0
    #allocation2 [shape = 'u8[1024]{0}', space=vmem, size = 0x400, scoped, tag = 'input window, operand 1, single buffered']
    #allocation3 [shape = 's32[1]{0}', space=sflag, size = 0x4, scoped, tag = 'scoped memory for tpu_custom_call.1']
    %12 = vsyncpa [#allocation3], 0
    // Predicated region
    $region2: #{tpu_custom_call.1} parent=1 // pred_check
      _
    $region3: #{tpu_custom_call.1} parent=1 // pred_check_branch
      %14 = sbr.rel (0) target = $region5
    $region4: #{tpu_custom_call.1} parent=1 // pred_region
      _
    $region5: #{tpu_custom_call.1} parent=1 // pred_fallthru
      _
    // Predicated region
    $region6: #{tpu_custom_call.1} parent=1 // pred_check
      _
    $region7: #{tpu_custom_call.1} parent=1 // pred_check_branch
      %16 = sbr.rel (0) target = $region9
    $region8: #{tpu_custom_call.1} parent=1 // pred_region
      %s18 = ssub.s32 32, 32
      %19 = vsyncadd [#allocation3], %s18
      %s20 = sshll.u32 [#allocation2], 4
      %s21 = int_to_ptr.vmem [resolvable:$true] %s20
      %26 = dma.hbm_to_vmem [thread:$0]  %s1, 32, %s21, [#allocation3], 16, 16, 1
    $region9: #{tpu_custom_call.1} parent=1 // pred_fallthru
      _
    // Predicated region
    $region10: #{tpu_custom_call.1} parent=1 // pred_check
      _
    $region11: #{tpu_custom_call.1} parent=1 // pred_check_branch
      %28 = sbr.rel (0) target = $region13
    $region12: #{tpu_custom_call.1} parent=1 // pred_region
      _
    $region13: #{tpu_custom_call.1} parent=1 // pred_fallthru
      _
    // Predicated region
    $region14: #{tpu_custom_call.1} parent=1 // pred_check
      _
    $region15: #{tpu_custom_call.1} parent=1 // pred_check_branch
      %30 = sbr.rel (0) target = $region17
    $region16: #{tpu_custom_call.1} parent=1 // pred_region
      _
    $region17: #{tpu_custom_call.1} parent=1 // pred_fallthru
      _
    // Predicated region
    $region18: #{tpu_custom_call.1} parent=1 // pred_check
      _
    $region19: #{tpu_custom_call.1} parent=1 // pred_check_branch
      %32 = sbr.rel (0) target = $region21
    $region20: #{tpu_custom_call.1} parent=1 // pred_region
      _
    $region21: #{tpu_custom_call.1} parent=1 // pred_fallthru
      _
    // Predicated region
    $region22: #{tpu_custom_call.1} parent=1 // pred_check
      _
    $region23: #{tpu_custom_call.1} parent=1 // pred_check_branch
      %34 = sbr.rel (0) target = $region25
    $region24: #{tpu_custom_call.1} parent=1 // pred_region
      _
    $region25: #{tpu_custom_call.1} parent=1 // pred_fallthru
      _
    // Predicated region
    $region26: #{tpu_custom_call.1} parent=1 // pred_check
      _
    $region27: #{tpu_custom_call.1} parent=1 // pred_check_branch
      %36 = sbr.rel (0) target = $region29
    $region28: #{tpu_custom_call.1} parent=1 // pred_region
      _
    $region29: #{tpu_custom_call.1} parent=1 // pred_fallthru
      _
    // Predicated region
    $region30: #{tpu_custom_call.1} parent=1 // pred_check
      _
    $region31: #{tpu_custom_call.1} parent=1 // pred_check_branch
      %38 = sbr.rel (0) target = $region33
    $region32: #{tpu_custom_call.1} parent=1 // pred_region
      %39 = dma.done [#allocation3], 32
    $region33: #{tpu_custom_call.1} parent=1 // pred_fallthru
      _
    %v41 = vld [vmem:[%s0] sm:$0xf]
    %v42 = vld [vmem:[%s0 + $0x4] sm:$0xf]
    %v43 = vld [vmem:[%s3] sm:$0xf]
    %v44 = vld [vmem:[%s3 + $0x4] sm:$0xf]
    %v45 = vld [vmem:[%s3 + $0x8] sm:$0xf]
    %v46 = vld [vmem:[%s3 + $0xc] sm:$0xf]
    %v47 = vld [vmem:[%s4] sm:$0x1]
    %v49 = vlaneseq
    %v50 = vshrl.u32 %v49, 7
    %v51 = vsub.s32 0, %v50
    %v52 = vrot.slane %v47, %v51
    %v56 = vunpack.c.l.b16 %v41
    %v57 = vunpack.c.l.b16 %v42
    %v58 = vpack.c.b16 %v57, %v56
    %v63 = vunpack.c.l.b16 %v43
    %v64 = vunpack.c.l.b16 %v44
    %v65 = vunpack.c.l.b16 %v45
    %v66 = vunpack.c.l.b16 %v46
    %v67 = vpack.c.b16 %v64, %v63
    %v68 = vpack.c.b16 %v66, %v65
    %vm71 = vcmask 261120
    %v73 = vsel %vm71, %v58, 0
    %75 = vmatprep.subr.bf16.mxu0 0
    %76 = vmatpush1.bf16.msra.mxu0 0
    %77 = vmatprep.subr.bf16.mxu0 0
    %78 = vmatpush1.bf16.msra.mxu0 0
    %79 = vmatprep.subr.bf16.mxu0 0
    %80 = vmatpush1.bf16.msra.mxu0 0
    %81 = vmatprep.subr.bf16.mxu0 0
    %82 = vmatpush1.bf16.msra.mxu0 0
    %83 = vmatprep.subr.bf16.mxu0 0
    %84 = vmatpush1.bf16.msra.mxu0 0
    %85 = vmatprep.subr.bf16.mxu0 0
    %86 = vmatpush1.bf16.msra.mxu0 0
    %87 = vmatprep.subr.bf16.mxu0 0
    %88 = vmatpush1.bf16.msra.mxu0 %v68
    %89 = vmatprep.subr.bf16.mxu0 0
    %90 = vmatpush1.bf16.msra.mxu0 %v67
    %91 = vmatprep.subr.bf16.mxu0 0
    %92 = vmatpush2.bf16.msra.mxu0 0
    %93 = vmatprep.subr.bf16.mxu0 0
    %94 = vmatpush2.bf16.msra.mxu0 0
    %95 = vmatprep.subr.bf16.mxu0 0
    %96 = vmatpush2.bf16.msra.mxu0 0
    %97 = vmatprep.subr.bf16.mxu0 0
    %98 = vmatpush2.bf16.msra.mxu0 0
    %99 = vmatprep.subr.bf16.mxu0 0
    %100 = vmatpush2.bf16.msra.mxu0 0
    %101 = vmatprep.subr.bf16.mxu0 0
    %102 = vmatpush2.bf16.msra.mxu0 0
    %103 = vmatprep.subr.bf16.mxu0 0
    %104 = vmatpush2.bf16.msra.mxu0 0
    %105 = vmatprep.subr.bf16.mxu0 0
    %106 = vmatpush2.bf16.msra.mxu0 0
    %107 = vmatprep.mubr.bf16.mxu0 0
    %108 = vmatmul.mubr.bf16.gmra.mxu0 %v73
    %v109 = vpop.f32.mrf.mxu0
    %v110 = vadd.f32 %v52, %v109
    %v111 = vpop.f32.mrf.mxu0
    %v112 = vpop.f32.mrf.mxu0
    %v113 = vadd.f32 %v52, %v112
    %v114 = vpop.f32.mrf.mxu0
    %115 = vdwg.mxu0
    %v116 = vmax.f32 %v110, 0.0
    %v117 = vmax.f32 %v113, 0.0
    %v118 = vld [vmem:[#allocation2] sm:$0x1]
    %v119 = vld [vmem:[#allocation2 + $0x1] sm:$0x1]
    %v122 = vlaneseq
    %v123 = vshrl.u32 %v122, 7
    %v124 = vsub.s32 0, %v123
    %v125 = vrot.slane %v118, %v124
    %v126 = vlaneseq
    %v127 = vshrl.u32 %v126, 7
    %v128 = vsub.s32 0, %v127
    %v129 = vrot.slane %v119, %v128
    %v132 = vmul.f32 %v116, %v125
    %v133 = vmul.f32 %v117, %v129
    %v134 = vpack.c.bf16 %v133, %v132
    %v135 = vld [vmem:[%s5] sm:$0xf]
    %v136 = vld [vmem:[%s5 + $0x4] sm:$0xf]
    %v137 = vld [vmem:[%s5 + $0x8] sm:$0xf]
    %v138 = vld [vmem:[%s5 + $0xc] sm:$0xf]
    %v139 = vld [vmem:[%s6] sm:$0x1]
    %v141 = vlaneseq
    %v142 = vshrl.u32 %v141, 7
    %v143 = vsub.s32 0, %v142
    %v144 = vrot.slane %v139, %v143
    %v150 = vunpack.c.l.b16 %v135
    %v151 = vunpack.c.l.b16 %v136
    %v152 = vunpack.c.l.b16 %v137
    %v153 = vunpack.c.l.b16 %v138
    %v154 = vpack.c.b16 %v151, %v150
    %v155 = vpack.c.b16 %v153, %v152
    %v159 = vsel %vm71, %v134, 0
    %161 = vmatprep.subr.bf16.mxu0 0
    %162 = vmatpush1.bf16.msra.mxu0 0
    %163 = vmatprep.subr.bf16.mxu0 0
    %164 = vmatpush1.bf16.msra.mxu0 0
    %165 = vmatprep.subr.bf16.mxu0 0
    %166 = vmatpush1.bf16.msra.mxu0 0
    %167 = vmatprep.subr.bf16.mxu0 0
    %168 = vmatpush1.bf16.msra.mxu0 0
    %169 = vmatprep.subr.bf16.mxu0 0
    %170 = vmatpush1.bf16.msra.mxu0 0
    %171 = vmatprep.subr.bf16.mxu0 0
    %172 = vmatpush1.bf16.msra.mxu0 0
    %173 = vmatprep.subr.bf16.mxu0 0
    %174 = vmatpush1.bf16.msra.mxu0 %v155
    %175 = vmatprep.subr.bf16.mxu0 0
    %176 = vmatpush1.bf16.msra.mxu0 %v154
    %177 = vmatprep.subr.bf16.mxu0 0
    %178 = vmatpush2.bf16.msra.mxu0 0
    %179 = vmatprep.subr.bf16.mxu0 0
    %180 = vmatpush2.bf16.msra.mxu0 0
    %181 = vmatprep.subr.bf16.mxu0 0
    %182 = vmatpush2.bf16.msra.mxu0 0
    %183 = vmatprep.subr.bf16.mxu0 0
    %184 = vmatpush2.bf16.msra.mxu0 0
    %185 = vmatprep.subr.bf16.mxu0 0
    %186 = vmatpush2.bf16.msra.mxu0 0
    %187 = vmatprep.subr.bf16.mxu0 0
    %188 = vmatpush2.bf16.msra.mxu0 0
    %189 = vmatprep.subr.bf16.mxu0 0
    %190 = vmatpush2.bf16.msra.mxu0 0
    %191 = vmatprep.subr.bf16.mxu0 0
    %192 = vmatpush2.bf16.msra.mxu0 0
    %193 = vmatprep.mubr.bf16.mxu0 0
    %194 = vmatmul.mubr.bf16.gmra.mxu0 %v159
    %v195 = vpop.f32.mrf.mxu0
    %v196 = vadd.f32 %v144, %v195
    %v197 = vpop.f32.mrf.mxu0
    %v198 = vpop.f32.mrf.mxu0
    %v199 = vadd.f32 %v144, %v198
    %v200 = vpop.f32.mrf.mxu0
    %201 = vdwg.mxu0
    %vm202 = vcmask 15360
    %v203 = vsel %vm202, %v196, -inf
    %v204 = vrot.slane %v203, 4
    %v205 = vmax.f32 %v203, %v204
    %v206 = vrot.slane %v205, 2
    %v207 = vmax.f32 %v205, %v206
    %v208 = vrot.slane %v207, 1
    %v209 = vmax.f32 %v207, %v208
    %v210 = vsel %vm202, %v199, -inf
    %v211 = vrot.slane %v210, 4
    %v212 = vmax.f32 %v210, %v211
    %v213 = vrot.slane %v212, 2
    %v214 = vmax.f32 %v212, %v213
    %v215 = vrot.slane %v214, 1
    %v216 = vmax.f32 %v214, %v215
    %v217 = vsub.f32 %v196, %v209
    %v218 = vsub.f32 %v199, %v216
    %v219 = vmul.f32 %v217, 1.442695
    %v220 = vpow.pop %v219
    %v221 = vmul.f32 %v218, 1.442695
    %v222 = vpow.pop %v221
    %v223 = vsel %vm202, %v220, 0.0
    %v224 = vrot.slane %v223, 4
    %v225 = vadd.f32 %v223, %v224
    %v226 = vrot.slane %v225, 2
    %v227 = vadd.f32 %v225, %v226
    %v228 = vrot.slane %v227, 1
    %v229 = vadd.f32 %v227, %v228
    %v230 = vsel %vm202, %v222, 0.0
    %v231 = vrot.slane %v230, 4
    %v232 = vadd.f32 %v230, %v231
    %v233 = vrot.slane %v232, 2
    %v234 = vadd.f32 %v232, %v233
    %v235 = vrot.slane %v234, 1
    %v236 = vadd.f32 %v234, %v235
    %v237 = vrcp.pop %v229
    %v238 = vrcp.pop %v236
    %v239 = vmul.f32 %v220, %v237
    %v240 = vmul.f32 %v222, %v238
    %v241 = vlaneseq
    %v242 = vshrl.u32 %v241, 7
    %v243 = vld [vmem:[%s2] sm:$0x1]
    %v244 = vld [vmem:[%s2 + $0x1] sm:$0x1]
    %v245 = vlaneseq
    %v246 = vshrl.u32 %v245, 7
    %v247 = vsub.s32 0, %v246
    %v248 = vrot.slane %v243, %v247
    %v249 = vlaneseq
    %v250 = vshrl.u32 %v249, 7
    %v251 = vsub.s32 0, %v250
    %v252 = vrot.slane %v244, %v251
    %253 = vset.pattern.permute.xlu0 0
    %254 = vperm.xlu0 %253, %v248
    %v255 = vpop.permute.xlu0 %254
    %256 = vset.pattern.permute.xlu0 0
    %257 = vperm.xlu0 %256, %v252
    %v258 = vpop.permute.xlu0 %257
    %vm259 = vcmp.ge.s32.totalorder %v242, %v255
    %vm260 = vcmp.ge.s32.totalorder %v242, %v258
    %v261 = vsel %vm259, 0.0, %v239
    %v262 = vsel %vm260, 0.0, %v240
    %v263 = vsel %vm202, %v261, 0.0
    %v264 = vrot.slane %v263, 4
    %v265 = vadd.f32 %v263, %v264
    %v266 = vrot.slane %v265, 2
    %v267 = vadd.f32 %v265, %v266
    %v268 = vrot.slane %v267, 1
    %v269 = vadd.f32 %v267, %v268
    %v270 = vsel %vm202, %v262, 0.0
    %v271 = vrot.slane %v270, 4
    %v272 = vadd.f32 %v270, %v271
    %v273 = vrot.slane %v272, 2
    %v274 = vadd.f32 %v272, %v273
    %v275 = vrot.slane %v274, 1
    %v276 = vadd.f32 %v274, %v275
    %vm277 = vcmp.eq.f32.partialorder %v269, 0.0
    %vm278 = vcmp.eq.f32.partialorder %v276, 0.0
    %v279 = vsel %vm277, 1, 0
    %v280 = vsel %vm278, 1, 0
    %v281 = vcvt.s32.f32 %v279
    %v282 = vcvt.s32.f32 %v280
    %v283 = vadd.f32 %v269, %v281
    %v284 = vadd.f32 %v276, %v282
    %v285 = vadd.f32 %v283, 1e-08
    %v286 = vadd.f32 %v284, 1e-08
    %v287 = vrcp.pop %v285
    %v288 = vrcp.pop %v286
    %v289 = vmul.f32 %v261, %v287
    %v290 = vmul.f32 %v262, %v288
    %291 = vst.msk [vmem:[%s7] sm:$0xff] %vm202, %v289
    %292 = vst.msk [vmem:[%s7 + $0x8] sm:$0xff] %vm202, %v290
    // Predicated region
    $region34: #{tpu_custom_call.1} parent=1 // pred_check
      _
    $region35: #{tpu_custom_call.1} parent=1 // pred_check_branch
      %294 = sbr.rel (0) target = $region37
    $region36: #{tpu_custom_call.1} parent=1 // pred_region
      _
    $region37: #{tpu_custom_call.1} parent=1 // pred_fallthru
      _
    // Predicated region
    $region38: #{tpu_custom_call.1} parent=1 // pred_check
      _
    $region39: #{tpu_custom_call.1} parent=1 // pred_check_branch
      %296 = sbr.rel (0) target = $region41
    $region40: #{tpu_custom_call.1} parent=1 // pred_region
      _
    $region41: #{tpu_custom_call.1} parent=1 // pred_fallthru
      _
    %297 = vsyncpa [#allocation3], 1

</llo_original>
